<compile_context>
chip_gen: v7x
topology: tpu7x:2x2x1
jax: 0.10.0
libtpu: 0.0.40
codegen_flags: <defaults>
</compile_context>

<pallas_src>
import jax
import jax.numpy as jnp
from jax import lax
from jax.experimental import pallas as pl
from jax.experimental.pallas import tpu as pltpu


def _critic_kernel(x_ref, w_ref, b_ref, o_ref):
    x = x_ref[...]          # (TB, D) f32 -- streamed batch tile
    w = w_ref[...]          # (1, D)  f32 -- resident weight
    b = b_ref[0]            # scalar bias from SMEM
    # GEMV as W (1,D) . x (TB,D)^T -> (1, TB): contraction over D, lane-dense
    # output.  Kernel is HBM-bound; MXU handles the contraction for free.
    y = lax.dot_general(
        w, x,
        dimension_numbers=(((1,), (1,)), ((), ())),
        preferred_element_type=jnp.float32,
    )                        # (1, TB)
    o_ref[...] = y + b       # fused bias add on the store path


def _pick_batch_tile(batch, d):
    # Largest lane-aligned tile that divides B while keeping the
    # double-buffered x tile (2 * TB * D * 4 bytes) under ~8 MiB, comfortably
    # inside the default scoped-VMEM budget on v5e / v6e / v7x.
    budget = 8 * 1024 * 1024
    for tb in (2048, 1024, 512, 256, 128):
        if batch % tb == 0 and 2 * tb * d * 4 <= budget:
            return tb
    return batch  # small / odd batch: single full-array block (always legal)


def mock_critic_forward(x, weight, bias):
    """x: (B, D); weight: (1, D) (torch layout); bias: (1,). Returns (B, 1)."""
    x = x.astype(jnp.float32)
    weight = weight.astype(jnp.float32)        # stays (1, D): no transpose needed
    bias = bias.reshape(1).astype(jnp.float32)

    batch, d = x.shape
    tb = _pick_batch_tile(batch, d)
    grid = (batch // tb,)

    out_1b = pl.pallas_call(
        _critic_kernel,
        out_shape=jax.ShapeDtypeStruct((1, batch), jnp.float32),
        grid=grid,
        in_specs=[
            pl.BlockSpec((tb, d), lambda i: (i, 0)),            # streamed x tiles
            pl.BlockSpec((1, d), lambda i: (0, 0)),             # resident weight
            pl.BlockSpec(memory_space=pltpu.MemorySpace.SMEM),  # scalar bias
        ],
        out_specs=pl.BlockSpec((1, tb), lambda i: (0, i)),      # lane-dense store
        compiler_params=pltpu.CompilerParams(
            dimension_semantics=("parallel",),   # shard tiles over v7x's 2 TCs
            vmem_limit_bytes=32 * 1024 * 1024,   # safe on all generations
        ),
        cost_estimate=pl.CostEstimate(
            flops=2 * batch * d,
            transcendentals=0,
            bytes_accessed=4 * (batch * d + d + 1 + batch),
        ),
    )(x, weight, bias)

    return out_1b.reshape(batch, 1)  # back to torch Linear's (B, 1) output


if __name__ == "__main__":
    input_dim = 4
    batch = 8

    key = jax.random.PRNGKey(0)
    kx, kw, kb = jax.random.split(key, 3)

    # Deterministic param init (mimics nn.Linear uniform(-1/sqrt(D), 1/sqrt(D)))
    bound = 1.0 / (input_dim ** 0.5)
    weight = jax.random.uniform(kw, (1, input_dim), jnp.float32, -bound, bound)
    bias = jax.random.uniform(kb, (1,), jnp.float32, -bound, bound)

    x = jax.random.normal(kx, (batch, input_dim), jnp.float32)

    out = jax.block_until_ready(mock_critic_forward(x, weight, bias))

    # Reference check against plain JAX (same semantics as torch F.linear)
    ref = x @ weight.T + bias
    assert out.shape == (batch, 1)
    assert jnp.allclose(out, ref, atol=1e-5, rtol=1e-5), "mismatch vs reference"

    print("KERNEL_OK")
</pallas_src>

<mosaic_0001>
module attributes {stable_mosaic.version = 11 : i64} {
  func.func @_critic_kernel(%arg0: i32, %arg1: memref<8x4xf32, #tpu.memory_space<vmem>>, %arg2: memref<1x4xf32, #tpu.memory_space<vmem>>, %arg3: memref<1xf32, #tpu.memory_space<smem>>, %arg4: memref<1x8xf32, #tpu.memory_space<vmem>>) attributes {dimension_semantics = [#tpu.dimension_semantics<parallel>], iteration_bounds = array<i64: 1>, scalar_prefetch = 0 : i64, scratch_operands = 0 : i64, tpu.core_type = #tpu.core_type<tc>, window_params = [{transform_indices = @transform_0, window_bounds = array<i64: 8, 4>}, {pipeline_mode = #tpu.pipeline_mode<synchronous>, transform_indices = @transform_1, window_bounds = array<i64: 1, 4>}, {transform_indices = @transform_2, window_bounds = array<i64: 1>}, {transform_indices = @transform_3, window_bounds = array<i64: 1, 8>}]} {
    %c0 = arith.constant 0 : index
    %c0_0 = arith.constant 0 : index
    %0 = vector.load %arg1[%c0, %c0_0] : memref<8x4xf32, #tpu.memory_space<vmem>>, vector<8x4xf32>
    %c0_1 = arith.constant 0 : index
    %c0_2 = arith.constant 0 : index
    %1 = vector.load %arg2[%c0_1, %c0_2] : memref<1x4xf32, #tpu.memory_space<vmem>>, vector<1x4xf32>
    %c0_3 = arith.constant 0 : index
    %2 = memref.load %arg3[%c0_3] : memref<1xf32, #tpu.memory_space<smem>>
    %cst = arith.constant dense<0.000000e+00> : vector<1x8xf32>
    %3 = tpu.matmul %1, %0, %cst {dimension_numbers = #tpu.dot_dimension_numbers<[1], [1], [0], [0], [0, 0, 1, 0], [], []>} : vector<1x4xf32>, vector<8x4xf32>, vector<1x8xf32> -> vector<1x8xf32>
    %4 = vector.broadcast %2 : f32 to vector<1x8xf32>
    %5 = arith.addf %3, %4 : vector<1x8xf32>
    %c0_4 = arith.constant 0 : index
    %c0_5 = arith.constant 0 : index
    %6 = vector.load %arg4[%c0_4, %c0_5] : memref<1x8xf32, #tpu.memory_space<vmem>>, vector<1x8xf32>
    tpu.vector_store %arg4[%c0_4, %c0_5], %5 {strides = array<i32>} : memref<1x8xf32, #tpu.memory_space<vmem>>, vector<1x8xf32>,
    return
  }
  func.func @transform_0(%arg0: i32) -> (i32, i32) {
    %c0_i32 = arith.constant 0 : i32
    %c0_i32_0 = arith.constant 0 : i32
    return %arg0, %c0_i32 : i32, i32
  }
  func.func @transform_1(%arg0: i32) -> (i32, i32) {
    %c0_i32 = arith.constant 0 : i32
    %c0_i32_0 = arith.constant 0 : i32
    %c0_i32_1 = arith.constant 0 : i32
    return %c0_i32, %c0_i32_0 : i32, i32
  }
  func.func @transform_2(%arg0: i32) -> i32 {
    %c0_i32 = arith.constant 0 : i32
    %c0_i32_0 = arith.constant 0 : i32
    return %c0_i32 : i32
  }
  func.func @transform_3(%arg0: i32) -> (i32, i32) {
    %c0_i32 = arith.constant 0 : i32
    %c0_i32_0 = arith.constant 0 : i32
    return %c0_i32, %arg0 : i32, i32
  }
}

</mosaic_0001>

<llo_original>
// kernel: tpu_custom_call.1
$region0: #{tpu_custom_call.1}
  #allocation0 [shape = 'u32[]', space=smem, size = 0x4, offset = 0x4, fixed_abs, tag = 'smem constant byte address 0x4 - core index']
  #allocation1 [shape = 'u32[144,128]{1,0:T(1,128)}', space=vmem, size = 0x12000, scoped, tag = 'internal scratch']
  #allocation2 [shape = 'f32[1]{0:T(128)S(6)}', space=smem, size = 0x200, scoped, tag = 'scoped memory for tpu_custom_call.1']
  %s0 = inlined_call_operand.vmem [shape: f32[8,4], index: 0, kind: input, shape index: {}]
  %s1 = inlined_call_operand.vmem [shape: f32[1,4], index: 1, kind: input, shape index: {}]
  %s2 = inlined_call_operand.<no memory space> [shape: f32[1], index: 2, kind: input, shape index: {}]
  %s3 = inlined_call_operand.hbm [shape: f32[1,8], index: 3, kind: output, shape index: {}]
  %s4 = sld [smem:[#allocation0]]
  $region22: #{tpu_custom_call.1} parent=0
    _
  %s6 = ssub.s32 1, %s4
  %s7 = scalar_select 0, %s6, %s4
  %8 = sst [smem:[#allocation2]] %s2
  $region1: #{tpu_custom_call.1} parent=0
    #allocation3 [shape = 'u8[512]{0}', space=vmem, size = 0x400, scoped, tag = 'output window, operand 0, single buffered']
    #allocation4 [shape = 's32[1]{0}', space=sflag, size = 0x4, scoped, tag = 'scoped memory for tpu_custom_call.1']
    %9 = vsyncpa [#allocation4], 0
    // Predicated region
    $region2: #{tpu_custom_call.1} parent=1 // pred_check
      _
    $region3: #{tpu_custom_call.1} parent=1 // pred_check_branch
      %11 = sbr.rel (0) target = $region5
    $region4: #{tpu_custom_call.1} parent=1 // pred_region
      _
    $region5: #{tpu_custom_call.1} parent=1 // pred_fallthru
      _
    // Predicated region
    $region6: #{tpu_custom_call.1} parent=1 // pred_check
      _
    $region7: #{tpu_custom_call.1} parent=1 // pred_check_branch
      %13 = sbr.rel (0) target = $region9
    $region8: #{tpu_custom_call.1} parent=1 // pred_region
      _
    $region9: #{tpu_custom_call.1} parent=1 // pred_fallthru
      _
    // Predicated region
    $region10: #{tpu_custom_call.1} parent=1 // pred_check
      _
    $region11: #{tpu_custom_call.1} parent=1 // pred_check_branch
      %15 = sbr.rel (0) target = $region13
    $region12: #{tpu_custom_call.1} parent=1 // pred_region
      _
    $region13: #{tpu_custom_call.1} parent=1 // pred_fallthru
      _
    %v16 = vld [vmem:[%s0] sm:$0xff]
    %v17 = vld [vmem:[%s1] sm:$0x1]
    %s18 = sld [smem:[#allocation2]]
    %v19 = vstv %s18
    %vm20 = vcmask 31744
    %v22 = vsel %vm20, %v17, 0
    %v25 = vsel %vm20, %v16, 0
    %27 = vmatprep.subr.mxu0 0.0
    %28 = vmatpush1.xpose.msra.mxu0 %v25
    %29 = vmatprep.subr.mxu0 0.0
    %30 = vmatpush1.xpose.msra.mxu0 0.0
    %31 = vmatprep.subr.mxu0 0.0
    %32 = vmatpush1.xpose.msra.mxu0 0.0
    %33 = vmatprep.subr.mxu0 0.0
    %34 = vmatpush1.xpose.msra.mxu0 0.0
    %35 = vmatprep.subr.mxu0 0.0
    %36 = vmatpush1.xpose.msra.mxu0 0.0
    %37 = vmatprep.subr.mxu0 0.0
    %38 = vmatpush1.xpose.msra.mxu0 0.0
    %39 = vmatprep.subr.mxu0 0.0
    %40 = vmatpush1.xpose.msra.mxu0 0.0
    %41 = vmatprep.subr.mxu0 0.0
    %42 = vmatpush1.xpose.msra.mxu0 0.0
    %43 = vmatprep.subr.mxu0 0.0
    %44 = vmatpush1.xpose.msra.mxu0 0.0
    %45 = vmatprep.subr.mxu0 0.0
    %46 = vmatpush1.xpose.msra.mxu0 0.0
    %47 = vmatprep.subr.mxu0 0.0
    %48 = vmatpush1.xpose.msra.mxu0 0.0
    %49 = vmatprep.subr.mxu0 0.0
    %50 = vmatpush1.xpose.msra.mxu0 0.0
    %51 = vmatprep.subr.mxu0 0.0
    %52 = vmatpush1.xpose.msra.mxu0 0.0
    %53 = vmatprep.subr.mxu0 0.0
    %54 = vmatpush1.xpose.msra.mxu0 0.0
    %55 = vmatprep.subr.mxu0 0.0
    %56 = vmatpush1.xpose.msra.mxu0 0.0
    %57 = vmatprep.subr.mxu0 0.0
    %58 = vmatpush1.xpose.msra.mxu0 0.0
    %59 = vmatprep.subr.mxu0 0.0
    %60 = vmatpush1.xpose.msra.mxu0 0.0
    %61 = vmatprep.subr.mxu0 0.0
    %62 = vmatpush1.xpose.msra.mxu0 0.0
    %63 = vmatprep.subr.mxu0 0.0
    %64 = vmatpush1.xpose.msra.mxu0 0.0
    %65 = vmatprep.subr.mxu0 0.0
    %66 = vmatpush1.xpose.msra.mxu0 0.0
    %67 = vmatprep.subr.mxu0 0.0
    %68 = vmatpush1.xpose.msra.mxu0 0.0
    %69 = vmatprep.subr.mxu0 0.0
    %70 = vmatpush1.xpose.msra.mxu0 0.0
    %71 = vmatprep.subr.mxu0 0.0
    %72 = vmatpush1.xpose.msra.mxu0 0.0
    %73 = vmatprep.subr.mxu0 0.0
    %74 = vmatpush1.xpose.msra.mxu0 0.0
    %75 = vmatprep.subr.mxu0 0.0
    %76 = vmatpush1.xpose.msra.mxu0 0.0
    %77 = vmatprep.subr.mxu0 0.0
    %78 = vmatpush1.xpose.msra.mxu0 0.0
    %79 = vmatprep.subr.mxu0 0.0
    %80 = vmatpush1.xpose.msra.mxu0 0.0
    %81 = vmatprep.subr.mxu0 0.0
    %82 = vmatpush1.xpose.msra.mxu0 0.0
    %83 = vmatprep.subr.mxu0 0.0
    %84 = vmatpush1.xpose.msra.mxu0 0.0
    %85 = vmatprep.subr.mxu0 0.0
    %86 = vmatpush1.xpose.msra.mxu0 0.0
    %87 = vmatprep.subr.mxu0 0.0
    %88 = vmatpush1.xpose.msra.mxu0 0.0
    %89 = vmatprep.subr.mxu0 0.0
    %90 = vmatpush1.xpose.msra.mxu0 0.0
    %91 = vmatprep.mubr.f32.mxu0 0.0
    %92 = vmatmul.mubr.f32.gmra.mrb[0].mxu0 %v22
    %v93 = vpop.f32.mrb[0].mxu0
    %v94 = vadd.f32 %v19, %v93
    %v95 = vpop.f32.mrb[0].mxu0
    %96 = vdwg.mxu0
    %vm97 = vcmask 57344
    %98 = vst.msk [vmem:[#allocation3] sm:$0x1] %vm97, %v94
    // Predicated region
    $region14: #{tpu_custom_call.1} parent=1 // pred_check
      _
    $region15: #{tpu_custom_call.1} parent=1 // pred_check_branch
      %100 = sbr.rel (0) target = $region17
    $region16: #{tpu_custom_call.1} parent=1 // pred_region
      %s102 = ssub.s32 16, 16
      %103 = vsyncadd [#allocation4], %s102
      %s105 = sshll.u32 [#allocation3], 4
      %s106 = int_to_ptr.vmem [resolvable:$true] %s105
      %108 = dma.vmem_to_hbm [thread:$0]  %s106, 16, %s3, [#allocation4]
    $region17: #{tpu_custom_call.1} parent=1 // pred_fallthru
      _
    // Predicated region
    $region18: #{tpu_custom_call.1} parent=1 // pred_check
      _
    $region19: #{tpu_custom_call.1} parent=1 // pred_check_branch
      %110 = sbr.rel (0) target = $region21
    $region20: #{tpu_custom_call.1} parent=1 // pred_region
      %111 = dma.done [#allocation4], 16
    $region21: #{tpu_custom_call.1} parent=1 // pred_fallthru
      _
    %112 = vsyncpa [#allocation4], 1

</llo_original>
